<compile_context>
chip_gen: v7x
topology: tpu7x:2x2x1
jax: 0.10.0
libtpu: 0.0.40
codegen_flags: <defaults>
</compile_context>

<pallas_src>
import functools

import jax
import jax.numpy as jnp
from jax.experimental import pallas as pl
from jax.experimental.pallas import tpu as pltpu


# ----------------------------------------------------------------------------
# Fused kernel: x -> [Linear + activation] * N -> out, all inside one kernel.
# ----------------------------------------------------------------------------
def _fused_mlp_kernel(*refs, activations):
    """refs = (x_ref, w0_ref, b0_ref, w1_ref, b1_ref, ..., o_ref).

    x_ref : (TB, K0)      VMEM  (K0 = Din * pack)
    wi_ref: (Ki, Ni)      VMEM  (block-diagonal, already transposed)
    bi_ref: (1, Ni)       VMEM
    o_ref : (TB, N_last)  VMEM
    Hidden activations stay in vregs / VMEM-local; no HBM round trips.
    """
    x_ref = refs[0]
    o_ref = refs[-1]
    params = refs[1:-1]

    h = x_ref[...]
    for li, act in enumerate(activations):
        w = params[2 * li][...]
        b = params[2 * li + 1][...]
        h = jnp.dot(h, w, preferred_element_type=jnp.float32) + b
        if act == "relu":
            h = jnp.maximum(h, 0.0)
        elif act == "sigmoid":
            # exp and the approximate reciprocal both issue on the otherwise
            # idle EUP slot (no VPU divide).  approx recip error ~1e-3 << tol.
            h = pl.reciprocal(1.0 + jnp.exp(-h), approx=True)
        elif act == "identity":
            pass
        else:
            raise ValueError(f"unknown activation: {act}")
    o_ref[...] = h.astype(o_ref.dtype)


# Per-grid-step activation footprint cap (input row + every layer output, f32).
# ~2 MiB/step keeps the double-buffered pipeline comfortably inside the
# default scoped-VMEM limit on v5e/v6e/v7x while amortising the ~0.35 us
# per-step fixed cost over thousands of batch rows.
_TILE_CAP_BYTES = 2 << 20


def _round_up(x: int, m: int) -> int:
    return ((x + m - 1) // m) * m


def _pick_tile_rows(n_rows: int, row_bytes: int) -> int:
    cap = max(8, ((_TILE_CAP_BYTES // row_bytes) // 8) * 8)
    # Aim for >= 4 grid steps so the "parallel" batch axis can be sharded
    # across v7x's two TensorCores.
    want = _round_up(max(pl.cdiv(n_rows, 4), 8), 8)
    return min(cap, want)


def fused_mlp_forward(x: jax.Array, params, activations) -> jax.Array:
    """One pallas_call for the whole (possibly row-packed) MLP forward pass.

    x:      (R, K0) float32
    params: [w0 (K0, N0), b0 (1, N0), w1 (N0, N1), b1 (1, N1), ...]
    """
    R, K0 = x.shape
    Nout = params[-1].shape[-1]
    n_in = 1 + len(params)
    kernel = functools.partial(_fused_mlp_kernel, activations=tuple(activations))

    # Advisory cost estimate so XLA schedules the custom call sensibly.
    flops, trans = 0, 0
    bytes_accessed = x.size * x.dtype.itemsize + R * Nout * 4
    for li, act in enumerate(activations):
        w = params[2 * li]
        bytes_accessed += (w.size + params[2 * li + 1].size) * 4
        flops += 2 * R * w.shape[0] * w.shape[1]
        if act == "sigmoid":
            trans += 2 * R * w.shape[1]  # exp + reciprocal
    cost = pl.CostEstimate(flops=int(flops), transcendentals=int(trans),
                           bytes_accessed=int(bytes_accessed))

    if R < 16:
        # Too small for two >= 8-row tiles: single invocation, every operand
        # fully resident in VMEM, no grid scaffolding.
        return pl.pallas_call(
            kernel,
            out_shape=jax.ShapeDtypeStruct((R, Nout), x.dtype),
            in_specs=[pl.BlockSpec(memory_space=pltpu.MemorySpace.VMEM)] * n_in,
            out_specs=pl.BlockSpec(memory_space=pltpu.MemorySpace.VMEM),
            cost_estimate=cost,
        )(x, *params)

    # Batch-tiled path: big tiles, >= 2 grid steps, NO padding copies — Pallas
    # masks the ragged last block on writeback.  Weights/biases map to block
    # (0, 0) every step and stay resident in VMEM.
    row_bytes = 4 * (K0 + sum(params[2 * i].shape[1]
                              for i in range(len(activations))))
    tb = _pick_tile_rows(R, row_bytes)
    grid = (pl.cdiv(R, tb),)

    in_specs = [pl.BlockSpec((tb, K0), lambda i: (i, 0))]
    for prm in params:
        in_specs.append(pl.BlockSpec(prm.shape, lambda i: (0, 0)))

    return pl.pallas_call(
        kernel,
        out_shape=jax.ShapeDtypeStruct((R, Nout), x.dtype),
        grid=grid,
        in_specs=in_specs,
        out_specs=pl.BlockSpec((tb, Nout), lambda i: (i, 0)),
        compiler_params=pltpu.CompilerParams(
            dimension_semantics=("parallel",)),
        cost_estimate=cost,
    )(x, *params)


@functools.partial(jax.jit, static_argnames=("activations", "pack", "out_features"))
def _packed_forward(x, params, activations, pack, out_features):
    B, Din = x.shape
    # (B, Din) -> (B/pack, Din*pack): same contiguous bytes, free reshape.
    xp = x.reshape(B // pack, Din * pack)
    out = fused_mlp_forward(xp, params, activations)
    # (B/pack, Dout*pack) -> (B, Dout): free reshape back.
    return out.reshape(B, out_features)


def _preferred_pack() -> int:
    """Rows packed per MXU row: 16 on 256-wide MXUs (v6e/v7x), 8 on v5e/older."""
    try:
        kind = jax.devices()[0].device_kind.lower()
    except Exception:
        return 8
    return 8 if any(t in kind for t in ("v2", "v3", "v4", "v5")) else 16


# ----------------------------------------------------------------------------
# MultiLayer equivalent: the layer list is fused into one kernel at call time.
# ----------------------------------------------------------------------------
class MultiLayerPallas:
    """Mirror of PyTorch MultiLayer: applies `layers` sequentially.

    Each layer entry is ("linear", weight (Dout, Din), bias (Dout,), activation)
    with activation in {"relu", "sigmoid", "identity"} standing for the
    nn.ReLU()/nn.Sigmoid() module following that Linear in the PyTorch list.
    All layout glue (weight transpose, block-diagonal row packing, bias->2D)
    is hoisted to construction; the per-forward path is exactly one
    pallas_call plus two free reshapes.
    """

    def __init__(self, layers):
        base, acts = [], []
        for kind, w, b, act in layers:
            if kind != "linear":
                raise ValueError(f"unknown layer kind: {kind}")
            base.append((jnp.asarray(w, jnp.float32).T,   # (Din, Dout)
                         jnp.asarray(b, jnp.float32)))    # (Dout,)
            acts.append(act)
        self._base = base
        self._acts = tuple(acts)
        self._din = base[0][0].shape[0]
        self._dout = base[-1][0].shape[1]
        self._p_pref = _preferred_pack()
        self._packed_cache = {}
        self._packed_params(self._p_pref)  # build the common case eagerly

    def _packed_params(self, pack: int):
        if pack not in self._packed_cache:
            params = []
            for w_t, b in self._base:
                if pack == 1:
                    params.append(w_t)
                    params.append(b.reshape(1, -1))
                else:
                    # Block-diagonal weight: `pack` batch rows share one MXU row.
                    params.append(jnp.kron(jnp.eye(pack, dtype=w_t.dtype), w_t))
                    params.append(jnp.tile(b, pack).reshape(1, -1))
            self._packed_cache[pack] = params
        return self._packed_cache[pack]

    def __call__(self, x: jax.Array) -> jax.Array:
        B, Din = x.shape
        if Din != self._din:
            raise ValueError(f"expected {self._din} input features, got {Din}")
        pack = 1
        if B >= 8 * self._p_pref:           # packing only pays off at scale
            pack = self._p_pref
            while pack > 1 and B % pack != 0:
                pack //= 2
        params = self._packed_params(pack)
        return _packed_forward(x, params, self._acts, pack, self._dout)


# ----------------------------------------------------------------------------
# Deterministic parameter init (PyTorch nn.Linear default: U(-1/sqrt(fan_in), +))
# ----------------------------------------------------------------------------
def init_linear(key, out_features: int, in_features: int):
    kw, kb = jax.random.split(key)
    bound = 1.0 / jnp.sqrt(jnp.float32(in_features))
    w = jax.random.uniform(kw, (out_features, in_features),
                           dtype=jnp.float32, minval=-bound, maxval=bound)
    b = jax.random.uniform(kb, (out_features,),
                           dtype=jnp.float32, minval=-bound, maxval=bound)
    return w, b


def _reference_forward(x, layers):
    for _, w, b, act in layers:
        x = x @ w.T + b
        if act == "relu":
            x = jnp.maximum(x, 0.0)
        elif act == "sigmoid":
            x = 1.0 / (1.0 + jnp.exp(-x))
    return x


if __name__ == "__main__":
    key = jax.random.PRNGKey(0)
    k_x, k_xb, k_xr, k_l1, k_l2 = jax.random.split(key, 5)

    in_features, hidden, out_features = 16, 32, 8
    w1, b1 = init_linear(k_l1, hidden, in_features)
    w2, b2 = init_linear(k_l2, out_features, hidden)

    # layers list analogous to: [Linear(16,32), ReLU(), Linear(32,8), Sigmoid()]
    layers = [
        ("linear", w1, b1, "relu"),
        ("linear", w2, b2, "sigmoid"),
    ]
    model = MultiLayerPallas(layers)

    # --- small batch: single fused kernel, no grid ---
    x = jax.random.normal(k_x, (2, in_features), dtype=jnp.float32)
    out = jax.block_until_ready(model(x))
    ref = _reference_forward(x, layers)
    assert out.shape == (2, out_features)
    # Tolerance covers the EUP approximate reciprocal in the sigmoid.
    assert jnp.allclose(out, ref, atol=5e-3, rtol=5e-3)

    # --- larger batch: row-packed block-diagonal weights, batch-tiled grid,
    #     lane-dense output, ragged last block masked by Pallas ---
    xb = jax.random.normal(k_xb, (2000, in_features), dtype=jnp.float32)
    out_b = jax.block_until_ready(model(xb))
    ref_b = _reference_forward(xb, layers)
    assert out_b.shape == (2000, out_features)
    assert jnp.allclose(out_b, ref_b, atol=5e-3, rtol=5e-3)

    # --- odd batch: exercises the unpacked fallback + ragged-block masking ---
    xr = jax.random.normal(k_xr, (37, in_features), dtype=jnp.float32)
    out_r = jax.block_until_ready(model(xr))
    ref_r = _reference_forward(xr, layers)
    assert out_r.shape == (37, out_features)
    assert jnp.allclose(out_r, ref_r, atol=5e-3, rtol=5e-3)

    print("KERNEL_OK")
</pallas_src>

<mosaic_0001>
module attributes {stable_mosaic.version = 11 : i64} {
  func.func @_fused_mlp_kernel(%arg0: memref<2x16xf32, #tpu.memory_space<vmem>>, %arg1: memref<16x32xf32, #tpu.memory_space<vmem>>, %arg2: memref<1x32xf32, #tpu.memory_space<vmem>>, %arg3: memref<32x8xf32, #tpu.memory_space<vmem>>, %arg4: memref<1x8xf32, #tpu.memory_space<vmem>>, %arg5: memref<2x8xf32, #tpu.memory_space<vmem>>) attributes {dimension_semantics = [], scalar_prefetch = 0 : i64, scratch_operands = 0 : i64, tpu.core_type = #tpu.core_type<tc>} {
    %c0 = arith.constant 0 : index
    %c0_0 = arith.constant 0 : index
    %0 = vector.load %arg0[%c0, %c0_0] : memref<2x16xf32, #tpu.memory_space<vmem>>, vector<2x16xf32>
    %c0_1 = arith.constant 0 : index
    %c0_2 = arith.constant 0 : index
    %1 = vector.load %arg1[%c0_1, %c0_2] : memref<16x32xf32, #tpu.memory_space<vmem>>, vector<16x32xf32>
    %c0_3 = arith.constant 0 : index
    %c0_4 = arith.constant 0 : index
    %2 = vector.load %arg2[%c0_3, %c0_4] : memref<1x32xf32, #tpu.memory_space<vmem>>, vector<1x32xf32>
    %cst = arith.constant dense<0.000000e+00> : vector<2x32xf32>
    %3 = tpu.matmul %0, %1, %cst {dimension_numbers = #tpu.dot_dimension_numbers<[1], [0], [0], [1], [0, 0, 1, 1], [], []>} : vector<2x16xf32>, vector<16x32xf32>, vector<2x32xf32> -> vector<2x32xf32>
    %4 = vector.broadcast %2 : vector<1x32xf32> to vector<2x32xf32>
    %5 = arith.addf %3, %4 : vector<2x32xf32>
    %cst_5 = arith.constant 0.000000e+00 : f32
    %6 = vector.broadcast %cst_5 : f32 to vector<2x32xf32>
    %7 = arith.maximumf %5, %6 : vector<2x32xf32>
    %c0_6 = arith.constant 0 : index
    %c0_7 = arith.constant 0 : index
    %8 = vector.load %arg3[%c0_6, %c0_7] : memref<32x8xf32, #tpu.memory_space<vmem>>, vector<32x8xf32>
    %c0_8 = arith.constant 0 : index
    %c0_9 = arith.constant 0 : index
    %9 = vector.load %arg4[%c0_8, %c0_9] : memref<1x8xf32, #tpu.memory_space<vmem>>, vector<1x8xf32>
    %cst_10 = arith.constant dense<0.000000e+00> : vector<2x8xf32>
    %10 = tpu.matmul %7, %8, %cst_10 {dimension_numbers = #tpu.dot_dimension_numbers<[1], [0], [0], [1], [0, 0, 1, 1], [], []>} : vector<2x32xf32>, vector<32x8xf32>, vector<2x8xf32> -> vector<2x8xf32>
    %11 = vector.broadcast %9 : vector<1x8xf32> to vector<2x8xf32>
    %12 = arith.addf %10, %11 : vector<2x8xf32>
    %cst_11 = arith.constant 0.000000e+00 : f32
    %13 = vector.broadcast %cst_11 : f32 to vector<2x8xf32>
    %14 = arith.subf %13, %12 : vector<2x8xf32>
    %15 = math.exp %14 : vector<2x8xf32>
    %cst_12 = arith.constant 1.000000e+00 : f32
    %16 = vector.broadcast %cst_12 : f32 to vector<2x8xf32>
    %17 = arith.addf %16, %15 : vector<2x8xf32>
    %18 = tpu.reciprocal %17 {approx = true} : vector<2x8xf32> -> vector<2x8xf32>
    %c0_13 = arith.constant 0 : index
    %c0_14 = arith.constant 0 : index
    %19 = vector.load %arg5[%c0_13, %c0_14] : memref<2x8xf32, #tpu.memory_space<vmem>>, vector<2x8xf32>
    tpu.vector_store %arg5[%c0_13, %c0_14], %18 {strides = array<i32>} : memref<2x8xf32, #tpu.memory_space<vmem>>, vector<2x8xf32>,
    return
  }
}

</mosaic_0001>

<llo_original>
// kernel: _packed_forward.1
$region0: #{_packed_forward.1}
  #allocation0 [shape = 'u32[]', space=smem, size = 0x4, offset = 0x4, fixed_abs, tag = 'smem constant byte address 0x4 - core index']
  #allocation1 [shape = 'u32[144,128]{1,0:T(1,128)}', space=vmem, size = 0x12000, scoped, tag = 'internal scratch']
  %s0 = inlined_call_operand.vmem [shape: f32[2,16], index: 0, kind: input, shape index: {}]
  %s1 = inlined_call_operand.vmem [shape: f32[16,32], index: 1, kind: input, shape index: {}]
  %s2 = inlined_call_operand.vmem [shape: f32[1,32], index: 2, kind: input, shape index: {}]
  %s3 = inlined_call_operand.vmem [shape: f32[32,8], index: 3, kind: input, shape index: {}]
  %s4 = inlined_call_operand.vmem [shape: f32[1,8], index: 4, kind: input, shape index: {}]
  %s5 = inlined_call_operand.hbm [shape: f32[2,8], index: 5, kind: output, shape index: {}]
  %s6 = sld [smem:[#allocation0]]
  $region30: #{_packed_forward.1} parent=0
    _
  %s8 = ssub.s32 1, %s6
  %s9 = scalar_select 0, %s8, %s6
  $region1: #{_packed_forward.1} parent=0
    #allocation2 [shape = 'u8[1024]{0}', space=vmem, size = 0x400, scoped, tag = 'output window, operand 0, single buffered']
    #allocation3 [shape = 's32[1]{0}', space=sflag, size = 0x4, scoped, tag = 'scoped memory for _packed_forward.1']
    %10 = vsyncpa [#allocation3], 0
    // Predicated region
    $region2: #{_packed_forward.1} parent=1 // pred_check
      _
    $region3: #{_packed_forward.1} parent=1 // pred_check_branch
      %12 = sbr.rel (0) target = $region5
    $region4: #{_packed_forward.1} parent=1 // pred_region
      _
    $region5: #{_packed_forward.1} parent=1 // pred_fallthru
      _
    // Predicated region
    $region6: #{_packed_forward.1} parent=1 // pred_check
      _
    $region7: #{_packed_forward.1} parent=1 // pred_check_branch
      %14 = sbr.rel (0) target = $region9
    $region8: #{_packed_forward.1} parent=1 // pred_region
      _
    $region9: #{_packed_forward.1} parent=1 // pred_fallthru
      _
    // Predicated region
    $region10: #{_packed_forward.1} parent=1 // pred_check
      _
    $region11: #{_packed_forward.1} parent=1 // pred_check_branch
      %16 = sbr.rel (0) target = $region13
    $region12: #{_packed_forward.1} parent=1 // pred_region
      _
    $region13: #{_packed_forward.1} parent=1 // pred_fallthru
      _
    // Predicated region
    $region14: #{_packed_forward.1} parent=1 // pred_check
      _
    $region15: #{_packed_forward.1} parent=1 // pred_check_branch
      %18 = sbr.rel (0) target = $region17
    $region16: #{_packed_forward.1} parent=1 // pred_region
      _
    $region17: #{_packed_forward.1} parent=1 // pred_fallthru
      _
    // Predicated region
    $region18: #{_packed_forward.1} parent=1 // pred_check
      _
    $region19: #{_packed_forward.1} parent=1 // pred_check_branch
      %20 = sbr.rel (0) target = $region21
    $region20: #{_packed_forward.1} parent=1 // pred_region
      _
    $region21: #{_packed_forward.1} parent=1 // pred_fallthru
      _
    %v21 = vld [vmem:[%s0] sm:$0x3]
    %v22 = vld [vmem:[%s1] sm:$0xff]
    %v23 = vld [vmem:[%s1 + $0x8] sm:$0xff]
    %v24 = vld [vmem:[%s2] sm:$0x1]
    %v26 = vlaneseq
    %v27 = vshrl.u32 %v26, 7
    %v28 = vsub.s32 0, %v27
    %v29 = vrot.slane %v24, %v28
    %vm31 = vcmask 130048
    %v33 = vsel %vm31, %v21, 0
    %35 = vmatprep.subr.mxu0 0.0
    %36 = vmatpush1.msra.mxu0 %v22
    %37 = vmatprep.subr.mxu0 0.0
    %38 = vmatpush1.msra.mxu0 %v23
    %39 = vmatprep.subr.mxu0 0.0
    %40 = vmatpush1.msra.mxu0 0.0
    %41 = vmatprep.subr.mxu0 0.0
    %42 = vmatpush1.msra.mxu0 0.0
    %43 = vmatprep.subr.mxu0 0.0
    %44 = vmatpush1.msra.mxu0 0.0
    %45 = vmatprep.subr.mxu0 0.0
    %46 = vmatpush1.msra.mxu0 0.0
    %47 = vmatprep.subr.mxu0 0.0
    %48 = vmatpush1.msra.mxu0 0.0
    %49 = vmatprep.subr.mxu0 0.0
    %50 = vmatpush1.msra.mxu0 0.0
    %51 = vmatprep.subr.mxu0 0.0
    %52 = vmatpush1.msra.mxu0 0.0
    %53 = vmatprep.subr.mxu0 0.0
    %54 = vmatpush1.msra.mxu0 0.0
    %55 = vmatprep.subr.mxu0 0.0
    %56 = vmatpush1.msra.mxu0 0.0
    %57 = vmatprep.subr.mxu0 0.0
    %58 = vmatpush1.msra.mxu0 0.0
    %59 = vmatprep.subr.mxu0 0.0
    %60 = vmatpush1.msra.mxu0 0.0
    %61 = vmatprep.subr.mxu0 0.0
    %62 = vmatpush1.msra.mxu0 0.0
    %63 = vmatprep.subr.mxu0 0.0
    %64 = vmatpush1.msra.mxu0 0.0
    %65 = vmatprep.subr.mxu0 0.0
    %66 = vmatpush1.msra.mxu0 0.0
    %67 = vmatprep.subr.mxu0 0.0
    %68 = vmatpush1.msra.mxu0 0.0
    %69 = vmatprep.subr.mxu0 0.0
    %70 = vmatpush1.msra.mxu0 0.0
    %71 = vmatprep.subr.mxu0 0.0
    %72 = vmatpush1.msra.mxu0 0.0
    %73 = vmatprep.subr.mxu0 0.0
    %74 = vmatpush1.msra.mxu0 0.0
    %75 = vmatprep.subr.mxu0 0.0
    %76 = vmatpush1.msra.mxu0 0.0
    %77 = vmatprep.subr.mxu0 0.0
    %78 = vmatpush1.msra.mxu0 0.0
    %79 = vmatprep.subr.mxu0 0.0
    %80 = vmatpush1.msra.mxu0 0.0
    %81 = vmatprep.subr.mxu0 0.0
    %82 = vmatpush1.msra.mxu0 0.0
    %83 = vmatprep.subr.mxu0 0.0
    %84 = vmatpush1.msra.mxu0 0.0
    %85 = vmatprep.subr.mxu0 0.0
    %86 = vmatpush1.msra.mxu0 0.0
    %87 = vmatprep.subr.mxu0 0.0
    %88 = vmatpush1.msra.mxu0 0.0
    %89 = vmatprep.subr.mxu0 0.0
    %90 = vmatpush1.msra.mxu0 0.0
    %91 = vmatprep.subr.mxu0 0.0
    %92 = vmatpush1.msra.mxu0 0.0
    %93 = vmatprep.subr.mxu0 0.0
    %94 = vmatpush1.msra.mxu0 0.0
    %95 = vmatprep.subr.mxu0 0.0
    %96 = vmatpush1.msra.mxu0 0.0
    %97 = vmatprep.subr.mxu0 0.0
    %98 = vmatpush1.msra.mxu0 0.0
    %99 = vmatprep.mubr.f32.mxu0 0.0
    %100 = vmatmul.mubr.f32.gmra.mrb[0].mxu0 %v33
    %v101 = vpop.f32.mrb[0].mxu0
    %v102 = vadd.f32 %v29, %v101
    %v103 = vpop.f32.mrb[0].mxu0
    %104 = vdwg.mxu0
    %v105 = vmax.f32 %v102, 0.0
    %v106 = vld [vmem:[%s3] sm:$0xff]
    %v107 = vld [vmem:[%s3 + $0x8] sm:$0xff]
    %v108 = vld [vmem:[%s3 + $0x10] sm:$0xff]
    %v109 = vld [vmem:[%s3 + $0x18] sm:$0xff]
    %v110 = vld [vmem:[%s4] sm:$0x1]
    %v112 = vlaneseq
    %v113 = vshrl.u32 %v112, 7
    %v114 = vsub.s32 0, %v113
    %v115 = vrot.slane %v110, %v114
    %vm117 = vcmask 261120
    %v119 = vsel %vm117, %v105, 0
    %121 = vmatprep.subr.mxu0 0.0
    %122 = vmatpush1.msra.mxu0 %v106
    %123 = vmatprep.subr.mxu0 0.0
    %124 = vmatpush1.msra.mxu0 %v107
    %125 = vmatprep.subr.mxu0 0.0
    %126 = vmatpush1.msra.mxu0 %v108
    %127 = vmatprep.subr.mxu0 0.0
    %128 = vmatpush1.msra.mxu0 %v109
    %129 = vmatprep.subr.mxu0 0.0
    %130 = vmatpush1.msra.mxu0 0.0
    %131 = vmatprep.subr.mxu0 0.0
    %132 = vmatpush1.msra.mxu0 0.0
    %133 = vmatprep.subr.mxu0 0.0
    %134 = vmatpush1.msra.mxu0 0.0
    %135 = vmatprep.subr.mxu0 0.0
    %136 = vmatpush1.msra.mxu0 0.0
    %137 = vmatprep.subr.mxu0 0.0
    %138 = vmatpush1.msra.mxu0 0.0
    %139 = vmatprep.subr.mxu0 0.0
    %140 = vmatpush1.msra.mxu0 0.0
    %141 = vmatprep.subr.mxu0 0.0
    %142 = vmatpush1.msra.mxu0 0.0
    %143 = vmatprep.subr.mxu0 0.0
    %144 = vmatpush1.msra.mxu0 0.0
    %145 = vmatprep.subr.mxu0 0.0
    %146 = vmatpush1.msra.mxu0 0.0
    %147 = vmatprep.subr.mxu0 0.0
    %148 = vmatpush1.msra.mxu0 0.0
    %149 = vmatprep.subr.mxu0 0.0
    %150 = vmatpush1.msra.mxu0 0.0
    %151 = vmatprep.subr.mxu0 0.0
    %152 = vmatpush1.msra.mxu0 0.0
    %153 = vmatprep.subr.mxu0 0.0
    %154 = vmatpush1.msra.mxu0 0.0
    %155 = vmatprep.subr.mxu0 0.0
    %156 = vmatpush1.msra.mxu0 0.0
    %157 = vmatprep.subr.mxu0 0.0
    %158 = vmatpush1.msra.mxu0 0.0
    %159 = vmatprep.subr.mxu0 0.0
    %160 = vmatpush1.msra.mxu0 0.0
    %161 = vmatprep.subr.mxu0 0.0
    %162 = vmatpush1.msra.mxu0 0.0
    %163 = vmatprep.subr.mxu0 0.0
    %164 = vmatpush1.msra.mxu0 0.0
    %165 = vmatprep.subr.mxu0 0.0
    %166 = vmatpush1.msra.mxu0 0.0
    %167 = vmatprep.subr.mxu0 0.0
    %168 = vmatpush1.msra.mxu0 0.0
    %169 = vmatprep.subr.mxu0 0.0
    %170 = vmatpush1.msra.mxu0 0.0
    %171 = vmatprep.subr.mxu0 0.0
    %172 = vmatpush1.msra.mxu0 0.0
    %173 = vmatprep.subr.mxu0 0.0
    %174 = vmatpush1.msra.mxu0 0.0
    %175 = vmatprep.subr.mxu0 0.0
    %176 = vmatpush1.msra.mxu0 0.0
    %177 = vmatprep.subr.mxu0 0.0
    %178 = vmatpush1.msra.mxu0 0.0
    %179 = vmatprep.subr.mxu0 0.0
    %180 = vmatpush1.msra.mxu0 0.0
    %181 = vmatprep.subr.mxu0 0.0
    %182 = vmatpush1.msra.mxu0 0.0
    %183 = vmatprep.subr.mxu0 0.0
    %184 = vmatpush1.msra.mxu0 0.0
    %185 = vmatprep.mubr.f32.mxu0 0.0
    %186 = vmatmul.mubr.f32.gmra.mrb[0].mxu0 %v119
    %v187 = vpop.f32.mrb[0].mxu0
    %v188 = vadd.f32 %v115, %v187
    %v189 = vpop.f32.mrb[0].mxu0
    %190 = vdwg.mxu0
    %v191 = vsub.f32 0.0, %v188
    %v192 = vmul.f32 %v191, 1.442695
    %v193 = vpow.pop %v192
    %v194 = vadd.f32 %v193, 1.0
    %v195 = vrcp.pop %v194
    %vm196 = vcmask 58368
    %197 = vst.msk [vmem:[#allocation2] sm:$0x3] %vm196, %v195
    // Predicated region
    $region22: #{_packed_forward.1} parent=1 // pred_check
      _
    $region23: #{_packed_forward.1} parent=1 // pred_check_branch
      %199 = sbr.rel (0) target = $region25
    $region24: #{_packed_forward.1} parent=1 // pred_region
      %s201 = ssub.s32 32, 32
      %202 = vsyncadd [#allocation3], %s201
      %s204 = sshll.u32 [#allocation2], 4
      %s205 = int_to_ptr.vmem [resolvable:$true] %s204
      %207 = dma.vmem_to_hbm [thread:$0]  %s205, 32, %s5, [#allocation3]
    $region25: #{_packed_forward.1} parent=1 // pred_fallthru
      _
    // Predicated region
    $region26: #{_packed_forward.1} parent=1 // pred_check
      _
    $region27: #{_packed_forward.1} parent=1 // pred_check_branch
      %209 = sbr.rel (0) target = $region29
    $region28: #{_packed_forward.1} parent=1 // pred_region
      %210 = dma.done [#allocation3], 32
    $region29: #{_packed_forward.1} parent=1 // pred_fallthru
      _
    %211 = vsyncpa [#allocation3], 1

</llo_original>
